<compile_context>
chip_gen: v7x
topology: tpu7x:2x2x1
jax: 0.10.0
libtpu: 0.0.40
codegen_flags: <defaults>
</compile_context>

<pallas_src>
import math
from functools import partial

import jax
import jax.numpy as jnp
from jax.experimental import pallas as pl
from jax.experimental.pallas import tpu as pltpu


_HIDDEN = 200          # logical hidden width of the first Linear
_HIDDEN_PAD = 256      # padded hidden width (2 f32 vregs / full MXU width)
_OUT_PAD = 128         # lane-dense internal width of the second matmul
_DEFAULT_TILE_B = 2048 # batch rows per grid step (v6e/v7x sweet spot)


def _round_up(x, m):
    return (x + m - 1) // m * m


def _gelu_tanh(x):
    # GeLU, tanh approximation -- matches the gelu used by the RE2-style
    # Linear(activations=True).
    # TODO(synk): switch to the exact erf GeLU if the original model uses
    # torch.nn.GELU's default erf form instead of the tanh approximation.
    c = math.sqrt(2.0 / math.pi)
    return 0.5 * x * (1.0 + jnp.tanh(c * (x + 0.044715 * x * x * x)))


def _mlp_kernel(x_ref, w1_ref, b1_ref, w2_ref, b2_ref, out_ref, *, n_out):
    """out = gelu(x @ W1 + b1) @ W2 + b2 for one batch tile per grid step."""
    x = x_ref[...].astype(jnp.bfloat16)              # [TB, Fin] f32 -> bf16 in-kernel
    h = jnp.dot(x, w1_ref[...],                      # [TB, 256] f32 accumulate
                preferred_element_type=jnp.float32) + b1_ref[...]
    h = _gelu_tanh(h)                                 # f32 on VPU/EUP
    y = jnp.dot(h.astype(jnp.bfloat16), w2_ref[...],  # [TB, 128] f32 accumulate
                preferred_element_type=jnp.float32) + b2_ref[...]
    out_ref[...] = y[:, :n_out]                       # store only the real C lanes


def prepare_params(w1, b1, w2, b2):
    """One-time weight prep: pad hidden->256, logits lane-dense->128, cast to bf16.

    Zero padding is exact: gelu(0) = 0 contributes nothing to the second matmul,
    and padded output lanes are never stored.
    """
    fin, hid = w1.shape
    _, C = w2.shape
    assert hid <= _HIDDEN_PAD and C <= _OUT_PAD
    w1p = jnp.zeros((fin, _HIDDEN_PAD), jnp.bfloat16).at[:, :hid].set(
        w1.astype(jnp.bfloat16))
    b1p = jnp.zeros((1, _HIDDEN_PAD), jnp.float32).at[0, :hid].set(
        b1.reshape(-1).astype(jnp.float32))
    w2p = jnp.zeros((_HIDDEN_PAD, _OUT_PAD), jnp.bfloat16).at[:hid, :C].set(
        w2.astype(jnp.bfloat16))
    b2p = jnp.zeros((1, _OUT_PAD), jnp.float32).at[0, :C].set(
        b2.reshape(-1).astype(jnp.float32))
    return w1p, b1p, w2p, b2p, C


def _pick_batch_tile(B, tile_b):
    """Batch rows per grid step.

    - B <= 8: one full-extent block (legal: block dim == full array dim), no padding.
    - otherwise: at least 2 grid steps (so v7x's two TensorCores both get work),
      interior blocks 8-row aligned; the ragged last block is clipped by Pallas.
    """
    if B <= 8:
        return B
    half = _round_up(pl.cdiv(B, 2), 8)
    return min(tile_b, half)


@partial(jax.jit, static_argnames=("n_out", "tile_b"))
def advanced_prediction(a, w1p, b1p, w2p, b2p, n_out, *, tile_b=_DEFAULT_TILE_B):
    """a: [B, 800] f32 (pre-concatenated matching features), padded params from
    prepare_params().  Returns logits [B, n_out] f32.  Inference-only."""
    B, fin = a.shape
    C = n_out
    tb = _pick_batch_tile(B, tile_b)
    grid = (pl.cdiv(B, tb),)

    flops = 2 * B * (fin * _HIDDEN_PAD + _HIDDEN_PAD * _OUT_PAD)
    bytes_accessed = (B * fin * 4                       # x read (f32, no wrapper copy)
                      + w1p.size * 2 + w2p.size * 2     # bf16 weights
                      + b1p.size * 4 + b2p.size * 4
                      + B * C * 4)                      # width-C f32 writeback

    kernel = partial(_mlp_kernel, n_out=C)

    out = pl.pallas_call(
        kernel,
        out_shape=jax.ShapeDtypeStruct((B, C), jnp.float32),
        grid=grid,
        in_specs=[
            pl.BlockSpec((tb, fin), lambda i: (i, 0)),                # x tiles (f32)
            pl.BlockSpec((fin, _HIDDEN_PAD), lambda i: (0, 0)),       # W1 resident
            pl.BlockSpec((1, _HIDDEN_PAD), lambda i: (0, 0)),         # b1 resident
            pl.BlockSpec((_HIDDEN_PAD, _OUT_PAD), lambda i: (0, 0)),  # W2 resident
            pl.BlockSpec((1, _OUT_PAD), lambda i: (0, 0)),            # b2 resident
        ],
        out_specs=pl.BlockSpec((tb, C), lambda i: (i, 0)),            # width-C output
        compiler_params=pltpu.CompilerParams(
            dimension_semantics=("parallel",),
            # ~12.5 MiB double-buffered f32 x tile @ tb=2048 + weights + temps
            # needs > v5e's 16 MiB scoped default; 32 MiB fits every generation
            # (v7x physical VMEM is 64 MiB).
            vmem_limit_bytes=32 << 20),
        cost_estimate=pl.CostEstimate(
            flops=flops,
            transcendentals=B * _HIDDEN_PAD,
            bytes_accessed=bytes_accessed),
    )(a, w1p, b1p, w2p, b2p)

    return out


def init_params(key, in_features=800, hidden=_HIDDEN, num_classes=4):
    """Deterministic synthetic init mirroring RE2 Linear init
    (normal(std=sqrt(2/in)) for the GeLU layer, sqrt(1/in) otherwise)."""
    k1, k2, k3, k4 = jax.random.split(key, 4)
    w1 = jax.random.normal(k1, (in_features, hidden), jnp.float32) * math.sqrt(
        2.0 / in_features)
    b1 = jax.random.normal(k3, (hidden,), jnp.float32) * 0.1
    w2 = jax.random.normal(k2, (hidden, num_classes), jnp.float32) * math.sqrt(
        1.0 / hidden)
    b2 = jax.random.normal(k4, (num_classes,), jnp.float32) * 0.1
    return w1, b1, w2, b2


def reference_f32(a, w1, b1, w2, b2):
    h = _gelu_tanh(a @ w1 + b1[None, :])
    return h @ w2 + b2[None, :]


def reference_bf16(a, w1, b1, w2, b2):
    """Reference mirroring the kernel's bf16 matmul operands / f32 accumulate."""
    h = jnp.dot(a.astype(jnp.bfloat16), w1.astype(jnp.bfloat16),
                preferred_element_type=jnp.float32) + b1[None, :]
    h = _gelu_tanh(h)
    return jnp.dot(h.astype(jnp.bfloat16), w2.astype(jnp.bfloat16),
                   preferred_element_type=jnp.float32) + b2[None, :]


if __name__ == "__main__":
    key = jax.random.PRNGKey(0)
    k_in, k_par, k_in2 = jax.random.split(key, 3)

    inp_features = 4                 # AdvancedPrediction => 200 * 4 = 800 inputs
    in_dim = 200 * inp_features
    num_classes = 4

    w1, b1, w2, b2 = init_params(k_par, in_dim, _HIDDEN, num_classes)
    w1p, b1p, w2p, b2p, C = prepare_params(w1, b1, w2, b2)

    # --- tiny batch (single full-extent block) -------------------------------
    batch = 2
    a = jax.random.normal(k_in, (batch, in_dim), jnp.float32)
    out = advanced_prediction(a, w1p, b1p, w2p, b2p, C)
    out = jax.block_until_ready(out)
    assert out.shape == (batch, num_classes)

    ref_matched = reference_bf16(a, w1, b1, w2, b2)
    assert jnp.allclose(out, ref_matched, atol=2e-3, rtol=2e-3), \
        "mismatch vs bf16-matched reference (B=2)"
    ref_f32 = reference_f32(a, w1, b1, w2, b2)
    assert jnp.allclose(out, ref_f32, atol=1e-1, rtol=1e-1), \
        "mismatch vs f32 reference (B=2)"

    # --- ragged batch (2 grid steps, clipped boundary block) -----------------
    batch2 = 13
    a2 = jax.random.normal(k_in2, (batch2, in_dim), jnp.float32)
    out2 = advanced_prediction(a2, w1p, b1p, w2p, b2p, C)
    out2 = jax.block_until_ready(out2)
    assert out2.shape == (batch2, num_classes)
    ref2 = reference_bf16(a2, w1, b1, w2, b2)
    assert jnp.allclose(out2, ref2, atol=2e-3, rtol=2e-3), \
        "mismatch vs bf16-matched reference (B=13, ragged tile)"

    print("KERNEL_OK")
</pallas_src>

<mosaic_0001>
module attributes {stable_mosaic.version = 11 : i64} {
  func.func @_mlp_kernel(%arg0: i32, %arg1: memref<2x800xf32, #tpu.memory_space<vmem>>, %arg2: memref<800x256xbf16, #tpu.memory_space<vmem>>, %arg3: memref<1x256xf32, #tpu.memory_space<vmem>>, %arg4: memref<256x128xbf16, #tpu.memory_space<vmem>>, %arg5: memref<1x128xf32, #tpu.memory_space<vmem>>, %arg6: memref<2x4xf32, #tpu.memory_space<vmem>>) attributes {dimension_semantics = [#tpu.dimension_semantics<parallel>], iteration_bounds = array<i64: 1>, scalar_prefetch = 0 : i64, scratch_operands = 0 : i64, tpu.core_type = #tpu.core_type<tc>, window_params = [{transform_indices = @transform_0, window_bounds = array<i64: 2, 800>}, {pipeline_mode = #tpu.pipeline_mode<synchronous>, transform_indices = @transform_1, window_bounds = array<i64: 800, 256>}, {pipeline_mode = #tpu.pipeline_mode<synchronous>, transform_indices = @transform_2, window_bounds = array<i64: 1, 256>}, {pipeline_mode = #tpu.pipeline_mode<synchronous>, transform_indices = @transform_3, window_bounds = array<i64: 256, 128>}, {pipeline_mode = #tpu.pipeline_mode<synchronous>, transform_indices = @transform_4, window_bounds = array<i64: 1, 128>}, {transform_indices = @transform_5, window_bounds = array<i64: 2, 4>}]} {
    %c0 = arith.constant 0 : index
    %c0_0 = arith.constant 0 : index
    %0 = vector.load %arg1[%c0, %c0_0] : memref<2x800xf32, #tpu.memory_space<vmem>>, vector<2x800xf32>
    %1 = arith.truncf %0 : vector<2x800xf32> to vector<2x800xbf16>
    %c0_1 = arith.constant 0 : index
    %c0_2 = arith.constant 0 : index
    %2 = vector.load %arg2[%c0_1, %c0_2] : memref<800x256xbf16, #tpu.memory_space<vmem>>, vector<800x256xbf16>
    %cst = arith.constant dense<0.000000e+00> : vector<2x256xf32>
    %3 = tpu.matmul %1, %2, %cst {dimension_numbers = #tpu.dot_dimension_numbers<[1], [0], [0], [1], [0, 0, 1, 1], [], []>} : vector<2x800xbf16>, vector<800x256xbf16>, vector<2x256xf32> -> vector<2x256xf32>
    %c0_3 = arith.constant 0 : index
    %c0_4 = arith.constant 0 : index
    %4 = vector.load %arg3[%c0_3, %c0_4] : memref<1x256xf32, #tpu.memory_space<vmem>>, vector<1x256xf32>
    %5 = vector.broadcast %4 : vector<1x256xf32> to vector<2x256xf32>
    %6 = arith.addf %3, %5 : vector<2x256xf32>
    %cst_5 = arith.constant 5.000000e-01 : f32
    %7 = vector.broadcast %cst_5 : f32 to vector<2x256xf32>
    %8 = arith.mulf %7, %6 : vector<2x256xf32>
    %cst_6 = arith.constant 4.471500e-02 : f32
    %9 = vector.broadcast %cst_6 : f32 to vector<2x256xf32>
    %10 = arith.mulf %9, %6 : vector<2x256xf32>
    %11 = arith.mulf %10, %6 : vector<2x256xf32>
    %12 = arith.mulf %11, %6 : vector<2x256xf32>
    %13 = arith.addf %6, %12 : vector<2x256xf32>
    %cst_7 = arith.constant 0.797884583 : f32
    %14 = vector.broadcast %cst_7 : f32 to vector<2x256xf32>
    %15 = arith.mulf %14, %13 : vector<2x256xf32>
    %16 = math.tanh %15 : vector<2x256xf32>
    %cst_8 = arith.constant 1.000000e+00 : f32
    %17 = vector.broadcast %cst_8 : f32 to vector<2x256xf32>
    %18 = arith.addf %17, %16 : vector<2x256xf32>
    %19 = arith.mulf %8, %18 : vector<2x256xf32>
    %20 = arith.truncf %19 : vector<2x256xf32> to vector<2x256xbf16>
    %c0_9 = arith.constant 0 : index
    %c0_10 = arith.constant 0 : index
    %21 = vector.load %arg4[%c0_9, %c0_10] : memref<256x128xbf16, #tpu.memory_space<vmem>>, vector<256x128xbf16>
    %cst_11 = arith.constant dense<0.000000e+00> : vector<2x128xf32>
    %22 = tpu.matmul %20, %21, %cst_11 {dimension_numbers = #tpu.dot_dimension_numbers<[1], [0], [0], [1], [0, 0, 1, 1], [], []>} : vector<2x256xbf16>, vector<256x128xbf16>, vector<2x128xf32> -> vector<2x128xf32>
    %c0_12 = arith.constant 0 : index
    %c0_13 = arith.constant 0 : index
    %23 = vector.load %arg5[%c0_12, %c0_13] : memref<1x128xf32, #tpu.memory_space<vmem>>, vector<1x128xf32>
    %24 = vector.broadcast %23 : vector<1x128xf32> to vector<2x128xf32>
    %25 = arith.addf %22, %24 : vector<2x128xf32>
    %26 = vector.extract_strided_slice %25 {offsets = [0, 0], sizes = [2, 4], strides = [1, 1]} : vector<2x128xf32> to vector<2x4xf32>
    %c0_14 = arith.constant 0 : index
    %c0_15 = arith.constant 0 : index
    %27 = vector.load %arg6[%c0_14, %c0_15] : memref<2x4xf32, #tpu.memory_space<vmem>>, vector<2x4xf32>
    tpu.vector_store %arg6[%c0_14, %c0_15], %26 {strides = array<i32>} : memref<2x4xf32, #tpu.memory_space<vmem>>, vector<2x4xf32>,
    return
  }
  func.func @transform_0(%arg0: i32) -> (i32, i32) {
    %c0_i32 = arith.constant 0 : i32
    %c0_i32_0 = arith.constant 0 : i32
    return %arg0, %c0_i32 : i32, i32
  }
  func.func @transform_1(%arg0: i32) -> (i32, i32) {
    %c0_i32 = arith.constant 0 : i32
    %c0_i32_0 = arith.constant 0 : i32
    %c0_i32_1 = arith.constant 0 : i32
    return %c0_i32, %c0_i32_0 : i32, i32
  }
  func.func @transform_2(%arg0: i32) -> (i32, i32) {
    %c0_i32 = arith.constant 0 : i32
    %c0_i32_0 = arith.constant 0 : i32
    %c0_i32_1 = arith.constant 0 : i32
    return %c0_i32, %c0_i32_0 : i32, i32
  }
  func.func @transform_3(%arg0: i32) -> (i32, i32) {
    %c0_i32 = arith.constant 0 : i32
    %c0_i32_0 = arith.constant 0 : i32
    %c0_i32_1 = arith.constant 0 : i32
    return %c0_i32, %c0_i32_0 : i32, i32
  }
  func.func @transform_4(%arg0: i32) -> (i32, i32) {
    %c0_i32 = arith.constant 0 : i32
    %c0_i32_0 = arith.constant 0 : i32
    %c0_i32_1 = arith.constant 0 : i32
    return %c0_i32, %c0_i32_0 : i32, i32
  }
  func.func @transform_5(%arg0: i32) -> (i32, i32) {
    %c0_i32 = arith.constant 0 : i32
    %c0_i32_0 = arith.constant 0 : i32
    return %arg0, %c0_i32 : i32, i32
  }
}

</mosaic_0001>

<llo_original>
// kernel: advanced_prediction.1
$region0: #{advanced_prediction.1}
  #allocation0 [shape = 'u32[]', space=smem, size = 0x4, offset = 0x4, fixed_abs, tag = 'smem constant byte address 0x4 - core index']
  #allocation1 [shape = 'u32[144,128]{1,0:T(1,128)}', space=vmem, size = 0x12000, scoped, tag = 'internal scratch']
  %s0 = inlined_call_operand.hbm [shape: f32[2,800], index: 0, kind: input, shape index: {}]
  %s1 = inlined_call_operand.hbm [shape: bf16[800,256], index: 1, kind: input, shape index: {}]
  %s2 = inlined_call_operand.vmem [shape: f32[1,256], index: 2, kind: input, shape index: {}]
  %s3 = inlined_call_operand.hbm [shape: bf16[256,128], index: 3, kind: input, shape index: {}]
  %s4 = inlined_call_operand.vmem [shape: f32[1,128], index: 4, kind: input, shape index: {}]
  %s5 = inlined_call_operand.hbm [shape: f32[2,4], index: 5, kind: output, shape index: {}]
  %s6 = sld [smem:[#allocation0]]
  $region42: #{advanced_prediction.1} parent=0
    _
  %s8 = ssub.s32 1, %s6
  %s9 = scalar_select 0, %s8, %s6
  $region1: #{advanced_prediction.1} parent=0
    #allocation2 [shape = 'u8[7168]{0}', space=vmem, size = 0x1c00, scoped, tag = 'input window, operand 0, single buffered']
    #allocation3 [shape = 's32[1]{0}', space=sflag, size = 0x4, scoped, tag = 'scoped memory for advanced_prediction.1']
    #allocation4 [shape = 's32[1]{0}', space=sflag, size = 0x4, scoped, tag = 'scoped memory for advanced_prediction.1']
    #allocation5 [shape = 'u8[409600]{0}', space=vmem, size = 0x64000, scoped, tag = 'input window, operand 1, single buffered']
    #allocation6 [shape = 's32[1]{0}', space=sflag, size = 0x4, scoped, tag = 'scoped memory for advanced_prediction.1']
    #allocation7 [shape = 'u8[65536]{0}', space=vmem, size = 0x10000, scoped, tag = 'input window, operand 3, single buffered']
    #allocation8 [shape = 'u8[1024]{0}', space=vmem, size = 0x400, scoped, tag = 'output window, operand 0, single buffered']
    %10 = vsyncpa [#allocation3], 0
    %11 = vsyncpa [#allocation6], 0
    %12 = vsyncpa [#allocation4], 0
    // Predicated region
    $region2: #{advanced_prediction.1} parent=1 // pred_check
      _
    $region3: #{advanced_prediction.1} parent=1 // pred_check_branch
      %14 = sbr.rel (0) target = $region5
    $region4: #{advanced_prediction.1} parent=1 // pred_region
      %s16 = ssub.s32 224, 224
      %17 = vsyncadd [#allocation3], %s16
      %s19 = sshll.u32 [#allocation2], 4
      %s20 = int_to_ptr.vmem [resolvable:$true] %s19
      %22 = dma.hbm_to_vmem [thread:$0]  %s0, 224, %s20, [#allocation3]
    $region5: #{advanced_prediction.1} parent=1 // pred_fallthru
      _
    // Predicated region
    $region6: #{advanced_prediction.1} parent=1 // pred_check
      _
    $region7: #{advanced_prediction.1} parent=1 // pred_check_branch
      %24 = sbr.rel (0) target = $region9
    $region8: #{advanced_prediction.1} parent=1 // pred_region
      %s26 = ssub.s32 12800, 12800
      %27 = vsyncadd [#allocation6], %s26
      %s28 = sshll.u32 [#allocation5], 4
      %s29 = int_to_ptr.vmem [resolvable:$true] %s28
      %34 = dma.hbm_to_vmem [thread:$0]  %s1, 12800, %s29, [#allocation6], 128, 128, 8
    $region9: #{advanced_prediction.1} parent=1 // pred_fallthru
      _
    // Predicated region
    $region10: #{advanced_prediction.1} parent=1 // pred_check
      _
    $region11: #{advanced_prediction.1} parent=1 // pred_check_branch
      %36 = sbr.rel (0) target = $region13
    $region12: #{advanced_prediction.1} parent=1 // pred_region
      _
    $region13: #{advanced_prediction.1} parent=1 // pred_fallthru
      _
    // Predicated region
    $region14: #{advanced_prediction.1} parent=1 // pred_check
      _
    $region15: #{advanced_prediction.1} parent=1 // pred_check_branch
      %38 = sbr.rel (0) target = $region17
    $region16: #{advanced_prediction.1} parent=1 // pred_region
      %s40 = ssub.s32 2048, 2048
      %41 = vsyncadd [#allocation6], %s40
      %s42 = sshll.u32 [#allocation7], 4
      %s43 = int_to_ptr.vmem [resolvable:$true] %s42
      %48 = dma.hbm_to_vmem [thread:$0]  %s3, 2048, %s43, [#allocation6], 64, 64, 4
    $region17: #{advanced_prediction.1} parent=1 // pred_fallthru
      _
    // Predicated region
    $region18: #{advanced_prediction.1} parent=1 // pred_check
      _
    $region19: #{advanced_prediction.1} parent=1 // pred_check_branch
      %50 = sbr.rel (0) target = $region21
    $region20: #{advanced_prediction.1} parent=1 // pred_region
      _
    $region21: #{advanced_prediction.1} parent=1 // pred_fallthru
      _
    // Predicated region
    $region22: #{advanced_prediction.1} parent=1 // pred_check
      _
    $region23: #{advanced_prediction.1} parent=1 // pred_check_branch
      %52 = sbr.rel (0) target = $region25
    $region24: #{advanced_prediction.1} parent=1 // pred_region
      %53 = dma.done [#allocation3], 224
    $region25: #{advanced_prediction.1} parent=1 // pred_fallthru
      _
    // Predicated region
    $region26: #{advanced_prediction.1} parent=1 // pred_check
      _
    $region27: #{advanced_prediction.1} parent=1 // pred_check_branch
      %55 = sbr.rel (0) target = $region29
    $region28: #{advanced_prediction.1} parent=1 // pred_region
      %56 = dma.done [#allocation6], 12800
    $region29: #{advanced_prediction.1} parent=1 // pred_fallthru
      _
    // Predicated region
    $region30: #{advanced_prediction.1} parent=1 // pred_check
      _
    $region31: #{advanced_prediction.1} parent=1 // pred_check_branch
      %58 = sbr.rel (0) target = $region33
    $region32: #{advanced_prediction.1} parent=1 // pred_region
      %59 = dma.done [#allocation6], 2048
    $region33: #{advanced_prediction.1} parent=1 // pred_fallthru
      _
    %v61 = vld [vmem:[#allocation2] sm:$0xff]
    %v62 = vld [vmem:[#allocation2 + $0x8] sm:$0x3f]
    %v65 = vcombine.high %v61, %v61
    %v67 = vunpack.c.l.s4 1983009808
    %v68 = vunpack.c.0.s8 %v67
    %v69 = vlaneseq
    %v70 = vshrl.u32 %v69, 7
    %v71 = vsub.s32 %v68, %v70
    %v72 = vrot.slane %v61, %v71
    %v74 = vunpack.c.l.s4 1983009808
    %v75 = vunpack.c.0.s8 %v74
    %v76 = vlaneseq
    %v77 = vshrl.u32 %v76, 7
    %v78 = vsub.s32 %v75, %v77
    %v79 = vrot.slane %v65, %v78
    %v80 = vcombine.high %v72, %v72
    %v81 = vcombine.high %v79, %v79
    %v82 = vcombine.high %v62, %v62
    %v84 = vunpack.c.l.s4 1983009808
    %v85 = vunpack.c.0.s8 %v84
    %v86 = vlaneseq
    %v87 = vshrl.u32 %v86, 7
    %v88 = vsub.s32 %v85, %v87
    %v89 = vrot.slane %v62, %v88
    %v91 = vunpack.c.l.s4 1983009808
    %v92 = vunpack.c.0.s8 %v91
    %v93 = vlaneseq
    %v94 = vshrl.u32 %v93, 7
    %v95 = vsub.s32 %v92, %v94
    %v96 = vrot.slane %v82, %v95
    %v97 = vcombine.high %v89, %v89
    %v105 = vpack.c.bf16 %v72, %v72
    %v106 = vpack.c.bf16 %v80, %v80
    %v107 = vpack.c.bf16 %v79, %v79
    %v108 = vpack.c.bf16 %v81, %v81
    %v109 = vpack.c.bf16 %v89, %v89
    %v110 = vpack.c.bf16 %v97, %v97
    %v111 = vpack.c.bf16 %v96, %v96
    %v112 = vld [vmem:[#allocation5] sm:$0xff]
    %v113 = vld [vmem:[#allocation5 + $0x8] sm:$0xff]
    %v114 = vld [vmem:[#allocation5 + $0x10] sm:$0xff]
    %v115 = vld [vmem:[#allocation5 + $0x18] sm:$0xff]
    %v116 = vld [vmem:[#allocation5 + $0x20] sm:$0xff]
    %v117 = vld [vmem:[#allocation5 + $0x28] sm:$0xff]
    %v118 = vld [vmem:[#allocation5 + $0x30] sm:$0xff]
    %v119 = vld [vmem:[#allocation5 + $0x38] sm:$0xff]
    %v120 = vld [vmem:[#allocation5 + $0x40] sm:$0xff]
    %v121 = vld [vmem:[#allocation5 + $0x48] sm:$0xff]
    %v122 = vld [vmem:[#allocation5 + $0x50] sm:$0xff]
    %v123 = vld [vmem:[#allocation5 + $0x58] sm:$0xff]
    %v124 = vld [vmem:[#allocation5 + $0x60] sm:$0xff]
    %v125 = vld [vmem:[#allocation5 + $0x68] sm:$0xff]
    %v126 = vld [vmem:[#allocation5 + $0x70] sm:$0xff]
    %v127 = vld [vmem:[#allocation5 + $0x78] sm:$0xff]
    %v128 = vld [vmem:[#allocation5 + $0x80] sm:$0xff]
    %v129 = vld [vmem:[#allocation5 + $0x88] sm:$0xff]
    %v130 = vld [vmem:[#allocation5 + $0x90] sm:$0xff]
    %v131 = vld [vmem:[#allocation5 + $0x98] sm:$0xff]
    %v132 = vld [vmem:[#allocation5 + $0xa0] sm:$0xff]
    %v133 = vld [vmem:[#allocation5 + $0xa8] sm:$0xff]
    %v134 = vld [vmem:[#allocation5 + $0xb0] sm:$0xff]
    %v135 = vld [vmem:[#allocation5 + $0xb8] sm:$0xff]
    %v136 = vld [vmem:[#allocation5 + $0xc0] sm:$0xff]
    %v137 = vld [vmem:[#allocation5 + $0xc8] sm:$0xff]
    %v138 = vld [vmem:[#allocation5 + $0xd0] sm:$0xff]
    %v139 = vld [vmem:[#allocation5 + $0xd8] sm:$0xff]
    %v140 = vld [vmem:[#allocation5 + $0xe0] sm:$0xff]
    %v141 = vld [vmem:[#allocation5 + $0xe8] sm:$0xff]
    %v142 = vld [vmem:[#allocation5 + $0xf0] sm:$0xff]
    %v143 = vld [vmem:[#allocation5 + $0xf8] sm:$0xff]
    %v144 = vld [vmem:[#allocation5 + $0x100] sm:$0xff]
    %v145 = vld [vmem:[#allocation5 + $0x108] sm:$0xff]
    %v146 = vld [vmem:[#allocation5 + $0x110] sm:$0xff]
    %v147 = vld [vmem:[#allocation5 + $0x118] sm:$0xff]
    %v148 = vld [vmem:[#allocation5 + $0x120] sm:$0xff]
    %v149 = vld [vmem:[#allocation5 + $0x128] sm:$0xff]
    %v150 = vld [vmem:[#allocation5 + $0x130] sm:$0xff]
    %v151 = vld [vmem:[#allocation5 + $0x138] sm:$0xff]
    %v152 = vld [vmem:[#allocation5 + $0x140] sm:$0xff]
    %v153 = vld [vmem:[#allocation5 + $0x148] sm:$0xff]
    %v154 = vld [vmem:[#allocation5 + $0x150] sm:$0xff]
    %v155 = vld [vmem:[#allocation5 + $0x158] sm:$0xff]
    %v156 = vld [vmem:[#allocation5 + $0x160] sm:$0xff]
    %v157 = vld [vmem:[#allocation5 + $0x168] sm:$0xff]
    %v158 = vld [vmem:[#allocation5 + $0x170] sm:$0xff]
    %v159 = vld [vmem:[#allocation5 + $0x178] sm:$0xff]
    %v160 = vld [vmem:[#allocation5 + $0x180] sm:$0xff]
    %v161 = vld [vmem:[#allocation5 + $0x188] sm:$0xff]
    %v162 = vld [vmem:[#allocation5 + $0x190] sm:$0xff]
    %v163 = vld [vmem:[#allocation5 + $0x198] sm:$0xff]
    %v164 = vld [vmem:[#allocation5 + $0x1a0] sm:$0xff]
    %v165 = vld [vmem:[#allocation5 + $0x1a8] sm:$0xff]
    %v166 = vld [vmem:[#allocation5 + $0x1b0] sm:$0xff]
    %v167 = vld [vmem:[#allocation5 + $0x1b8] sm:$0xff]
    %v168 = vld [vmem:[#allocation5 + $0x1c0] sm:$0xff]
    %v169 = vld [vmem:[#allocation5 + $0x1c8] sm:$0xff]
    %v170 = vld [vmem:[#allocation5 + $0x1d0] sm:$0xff]
    %v171 = vld [vmem:[#allocation5 + $0x1d8] sm:$0xff]
    %v172 = vld [vmem:[#allocation5 + $0x1e0] sm:$0xff]
    %v173 = vld [vmem:[#allocation5 + $0x1e8] sm:$0xff]
    %v174 = vld [vmem:[#allocation5 + $0x1f0] sm:$0xff]
    %v175 = vld [vmem:[#allocation5 + $0x1f8] sm:$0xff]
    %v176 = vld [vmem:[#allocation5 + $0x200] sm:$0xff]
    %v177 = vld [vmem:[#allocation5 + $0x208] sm:$0xff]
    %v178 = vld [vmem:[#allocation5 + $0x210] sm:$0xff]
    %v179 = vld [vmem:[#allocation5 + $0x218] sm:$0xff]
    %v180 = vld [vmem:[#allocation5 + $0x220] sm:$0xff]
    %v181 = vld [vmem:[#allocation5 + $0x228] sm:$0xff]
    %v182 = vld [vmem:[#allocation5 + $0x230] sm:$0xff]
    %v183 = vld [vmem:[#allocation5 + $0x238] sm:$0xff]
    %v184 = vld [vmem:[#allocation5 + $0x240] sm:$0xff]
    %v185 = vld [vmem:[#allocation5 + $0x248] sm:$0xff]
    %v186 = vld [vmem:[#allocation5 + $0x250] sm:$0xff]
    %v187 = vld [vmem:[#allocation5 + $0x258] sm:$0xff]
    %v188 = vld [vmem:[#allocation5 + $0x260] sm:$0xff]
    %v189 = vld [vmem:[#allocation5 + $0x268] sm:$0xff]
    %v190 = vld [vmem:[#allocation5 + $0x270] sm:$0xff]
    %v191 = vld [vmem:[#allocation5 + $0x278] sm:$0xff]
    %v192 = vld [vmem:[#allocation5 + $0x280] sm:$0xff]
    %v193 = vld [vmem:[#allocation5 + $0x288] sm:$0xff]
    %v194 = vld [vmem:[#allocation5 + $0x290] sm:$0xff]
    %v195 = vld [vmem:[#allocation5 + $0x298] sm:$0xff]
    %v196 = vld [vmem:[#allocation5 + $0x2a0] sm:$0xff]
    %v197 = vld [vmem:[#allocation5 + $0x2a8] sm:$0xff]
    %v198 = vld [vmem:[#allocation5 + $0x2b0] sm:$0xff]
    %v199 = vld [vmem:[#allocation5 + $0x2b8] sm:$0xff]
    %v200 = vld [vmem:[#allocation5 + $0x2c0] sm:$0xff]
    %v201 = vld [vmem:[#allocation5 + $0x2c8] sm:$0xff]
    %v202 = vld [vmem:[#allocation5 + $0x2d0] sm:$0xff]
    %v203 = vld [vmem:[#allocation5 + $0x2d8] sm:$0xff]
    %v204 = vld [vmem:[#allocation5 + $0x2e0] sm:$0xff]
    %v205 = vld [vmem:[#allocation5 + $0x2e8] sm:$0xff]
    %v206 = vld [vmem:[#allocation5 + $0x2f0] sm:$0xff]
    %v207 = vld [vmem:[#allocation5 + $0x2f8] sm:$0xff]
    %v208 = vld [vmem:[#allocation5 + $0x300] sm:$0xff]
    %v209 = vld [vmem:[#allocation5 + $0x308] sm:$0xff]
    %v210 = vld [vmem:[#allocation5 + $0x310] sm:$0xff]
    %v211 = vld [vmem:[#allocation5 + $0x318] sm:$0xff]
    %v212 = vld [vmem:[%s2] sm:$0x3]
    %v214 = vlaneseq
    %v215 = vshrl.u32 %v214, 7
    %v216 = vsub.s32 0, %v215
    %v217 = vrot.slane %v212, %v216
    %v218 = vlaneseq
    %v219 = vshrl.u32 %v218, 7
    %v220 = vsub.s32 1, %v219
    %v221 = vrot.slane %v212, %v220
    %v324 = vunpack.c.l.b16 %v112
    %v325 = vunpack.c.h.b16 %v112
    %v326 = vunpack.c.l.b16 %v113
    %v327 = vunpack.c.h.b16 %v113
    %v328 = vunpack.c.l.b16 %v114
    %v329 = vunpack.c.h.b16 %v114
    %v330 = vunpack.c.l.b16 %v115
    %v331 = vunpack.c.h.b16 %v115
    %v332 = vunpack.c.l.b16 %v116
    %v333 = vunpack.c.h.b16 %v116
    %v334 = vunpack.c.l.b16 %v117
    %v335 = vunpack.c.h.b16 %v117
    %v336 = vunpack.c.l.b16 %v118
    %v337 = vunpack.c.h.b16 %v118
    %v338 = vunpack.c.l.b16 %v119
    %v339 = vunpack.c.h.b16 %v119
    %v340 = vunpack.c.l.b16 %v120
    %v341 = vunpack.c.h.b16 %v120
    %v342 = vunpack.c.l.b16 %v121
    %v343 = vunpack.c.h.b16 %v121
    %v344 = vunpack.c.l.b16 %v122
    %v345 = vunpack.c.h.b16 %v122
    %v346 = vunpack.c.l.b16 %v123
    %v347 = vunpack.c.h.b16 %v123
    %v348 = vunpack.c.l.b16 %v124
    %v349 = vunpack.c.h.b16 %v124
    %v350 = vunpack.c.l.b16 %v125
    %v351 = vunpack.c.h.b16 %v125
    %v352 = vunpack.c.l.b16 %v126
    %v353 = vunpack.c.h.b16 %v126
    %v354 = vunpack.c.l.b16 %v127
    %v355 = vunpack.c.h.b16 %v127
    %v356 = vunpack.c.l.b16 %v128
    %v357 = vunpack.c.h.b16 %v128
    %v358 = vunpack.c.l.b16 %v129
    %v359 = vunpack.c.h.b16 %v129
    %v360 = vunpack.c.l.b16 %v130
    %v361 = vunpack.c.h.b16 %v130
    %v362 = vunpack.c.l.b16 %v131
    %v363 = vunpack.c.h.b16 %v131
    %v364 = vunpack.c.l.b16 %v132
    %v365 = vunpack.c.h.b16 %v132
    %v366 = vunpack.c.l.b16 %v133
    %v367 = vunpack.c.h.b16 %v133
    %v368 = vunpack.c.l.b16 %v134
    %v369 = vunpack.c.h.b16 %v134
    %v370 = vunpack.c.l.b16 %v135
    %v371 = vunpack.c.h.b16 %v135
    %v372 = vunpack.c.l.b16 %v136
    %v373 = vunpack.c.h.b16 %v136
    %v374 = vunpack.c.l.b16 %v137
    %v375 = vunpack.c.h.b16 %v137
    %v376 = vunpack.c.l.b16 %v138
    %v377 = vunpack.c.h.b16 %v138
    %v378 = vunpack.c.l.b16 %v139
    %v379 = vunpack.c.h.b16 %v139
    %v380 = vunpack.c.l.b16 %v140
    %v381 = vunpack.c.h.b16 %v140
    %v382 = vunpack.c.l.b16 %v141
    %v383 = vunpack.c.h.b16 %v141
    %v384 = vunpack.c.l.b16 %v142
    %v385 = vunpack.c.h.b16 %v142
    %v386 = vunpack.c.l.b16 %v143
    %v387 = vunpack.c.h.b16 %v143
    %v388 = vunpack.c.l.b16 %v144
    %v389 = vunpack.c.h.b16 %v144
    %v390 = vunpack.c.l.b16 %v145
    %v391 = vunpack.c.h.b16 %v145
    %v392 = vunpack.c.l.b16 %v146
    %v393 = vunpack.c.h.b16 %v146
    %v394 = vunpack.c.l.b16 %v147
    %v395 = vunpack.c.h.b16 %v147
    %v396 = vunpack.c.l.b16 %v148
    %v397 = vunpack.c.h.b16 %v148
    %v398 = vunpack.c.l.b16 %v149
    %v399 = vunpack.c.h.b16 %v149
    %v400 = vunpack.c.l.b16 %v150
    %v401 = vunpack.c.h.b16 %v150
    %v402 = vunpack.c.l.b16 %v151
    %v403 = vunpack.c.h.b16 %v151
    %v404 = vunpack.c.l.b16 %v152
    %v405 = vunpack.c.h.b16 %v152
    %v406 = vunpack.c.l.b16 %v153
    %v407 = vunpack.c.h.b16 %v153
    %v408 = vunpack.c.l.b16 %v154
    %v409 = vunpack.c.h.b16 %v154
    %v410 = vunpack.c.l.b16 %v155
    %v411 = vunpack.c.h.b16 %v155
    %v412 = vunpack.c.l.b16 %v156
    %v413 = vunpack.c.h.b16 %v156
    %v414 = vunpack.c.l.b16 %v157
    %v415 = vunpack.c.h.b16 %v157
    %v416 = vunpack.c.l.b16 %v158
    %v417 = vunpack.c.h.b16 %v158
    %v418 = vunpack.c.l.b16 %v159
    %v419 = vunpack.c.h.b16 %v159
    %v420 = vunpack.c.l.b16 %v160
    %v421 = vunpack.c.h.b16 %v160
    %v422 = vunpack.c.l.b16 %v161
    %v423 = vunpack.c.h.b16 %v161
    %v424 = vunpack.c.l.b16 %v162
    %v425 = vunpack.c.h.b16 %v162
    %v426 = vunpack.c.l.b16 %v163
    %v427 = vunpack.c.h.b16 %v163
    %v428 = vunpack.c.l.b16 %v164
    %v429 = vunpack.c.h.b16 %v164
    %v430 = vunpack.c.l.b16 %v165
    %v431 = vunpack.c.h.b16 %v165
    %v432 = vunpack.c.l.b16 %v166
    %v433 = vunpack.c.h.b16 %v166
    %v434 = vunpack.c.l.b16 %v167
    %v435 = vunpack.c.h.b16 %v167
    %v436 = vunpack.c.l.b16 %v168
    %v437 = vunpack.c.h.b16 %v168
    %v438 = vunpack.c.l.b16 %v169
    %v439 = vunpack.c.h.b16 %v169
    %v440 = vunpack.c.l.b16 %v170
    %v441 = vunpack.c.h.b16 %v170
    %v442 = vunpack.c.l.b16 %v171
    %v443 = vunpack.c.h.b16 %v171
    %v444 = vunpack.c.l.b16 %v172
    %v445 = vunpack.c.h.b16 %v172
    %v446 = vunpack.c.l.b16 %v173
    %v447 = vunpack.c.h.b16 %v173
    %v448 = vunpack.c.l.b16 %v174
    %v449 = vunpack.c.h.b16 %v174
    %v450 = vunpack.c.l.b16 %v175
    %v451 = vunpack.c.h.b16 %v175
    %v452 = vunpack.c.l.b16 %v176
    %v453 = vunpack.c.h.b16 %v176
    %v454 = vunpack.c.l.b16 %v177
    %v455 = vunpack.c.h.b16 %v177
    %v456 = vunpack.c.l.b16 %v178
    %v457 = vunpack.c.h.b16 %v178
    %v458 = vunpack.c.l.b16 %v179
    %v459 = vunpack.c.h.b16 %v179
    %v460 = vunpack.c.l.b16 %v180
    %v461 = vunpack.c.h.b16 %v180
    %v462 = vunpack.c.l.b16 %v181
    %v463 = vunpack.c.h.b16 %v181
    %v464 = vunpack.c.l.b16 %v182
    %v465 = vunpack.c.h.b16 %v182
    %v466 = vunpack.c.l.b16 %v183
    %v467 = vunpack.c.h.b16 %v183
    %v468 = vunpack.c.l.b16 %v184
    %v469 = vunpack.c.h.b16 %v184
    %v470 = vunpack.c.l.b16 %v185
    %v471 = vunpack.c.h.b16 %v185
    %v472 = vunpack.c.l.b16 %v186
    %v473 = vunpack.c.h.b16 %v186
    %v474 = vunpack.c.l.b16 %v187
    %v475 = vunpack.c.h.b16 %v187
    %v476 = vunpack.c.l.b16 %v188
    %v477 = vunpack.c.h.b16 %v188
    %v478 = vunpack.c.l.b16 %v189
    %v479 = vunpack.c.h.b16 %v189
    %v480 = vunpack.c.l.b16 %v190
    %v481 = vunpack.c.h.b16 %v190
    %v482 = vunpack.c.l.b16 %v191
    %v483 = vunpack.c.h.b16 %v191
    %v484 = vunpack.c.l.b16 %v192
    %v485 = vunpack.c.h.b16 %v192
    %v486 = vunpack.c.l.b16 %v193
    %v487 = vunpack.c.h.b16 %v193
    %v488 = vunpack.c.l.b16 %v194
    %v489 = vunpack.c.h.b16 %v194
    %v490 = vunpack.c.l.b16 %v195
    %v491 = vunpack.c.h.b16 %v195
    %v492 = vunpack.c.l.b16 %v196
    %v493 = vunpack.c.h.b16 %v196
    %v494 = vunpack.c.l.b16 %v197
    %v495 = vunpack.c.h.b16 %v197
    %v496 = vunpack.c.l.b16 %v198
    %v497 = vunpack.c.h.b16 %v198
    %v498 = vunpack.c.l.b16 %v199
    %v499 = vunpack.c.h.b16 %v199
    %v500 = vunpack.c.l.b16 %v200
    %v501 = vunpack.c.h.b16 %v200
    %v502 = vunpack.c.l.b16 %v201
    %v503 = vunpack.c.h.b16 %v201
    %v504 = vunpack.c.l.b16 %v202
    %v505 = vunpack.c.h.b16 %v202
    %v506 = vunpack.c.l.b16 %v203
    %v507 = vunpack.c.h.b16 %v203
    %v508 = vunpack.c.l.b16 %v204
    %v509 = vunpack.c.h.b16 %v204
    %v510 = vunpack.c.l.b16 %v205
    %v511 = vunpack.c.h.b16 %v205
    %v512 = vunpack.c.l.b16 %v206
    %v513 = vunpack.c.h.b16 %v206
    %v514 = vunpack.c.l.b16 %v207
    %v515 = vunpack.c.h.b16 %v207
    %v516 = vunpack.c.l.b16 %v208
    %v517 = vunpack.c.h.b16 %v208
    %v518 = vunpack.c.l.b16 %v209
    %v519 = vunpack.c.h.b16 %v209
    %v520 = vunpack.c.l.b16 %v210
    %v521 = vunpack.c.h.b16 %v210
    %v522 = vunpack.c.l.b16 %v211
    %v523 = vunpack.c.h.b16 %v211
    %v524 = vpack.c.b16 %v326, %v324
    %v525 = vpack.c.b16 %v327, %v325
    %v526 = vpack.c.b16 %v330, %v328
    %v527 = vpack.c.b16 %v331, %v329
    %v528 = vpack.c.b16 %v334, %v332
    %v529 = vpack.c.b16 %v335, %v333
    %v530 = vpack.c.b16 %v338, %v336
    %v531 = vpack.c.b16 %v339, %v337
    %v532 = vpack.c.b16 %v342, %v340
    %v533 = vpack.c.b16 %v343, %v341
    %v534 = vpack.c.b16 %v346, %v344
    %v535 = vpack.c.b16 %v347, %v345
    %v536 = vpack.c.b16 %v350, %v348
    %v537 = vpack.c.b16 %v351, %v349
    %v538 = vpack.c.b16 %v354, %v352
    %v539 = vpack.c.b16 %v355, %v353
    %v540 = vpack.c.b16 %v358, %v356
    %v541 = vpack.c.b16 %v359, %v357
    %v542 = vpack.c.b16 %v362, %v360
    %v543 = vpack.c.b16 %v363, %v361
    %v544 = vpack.c.b16 %v366, %v364
    %v545 = vpack.c.b16 %v367, %v365
    %v546 = vpack.c.b16 %v370, %v368
    %v547 = vpack.c.b16 %v371, %v369
    %v548 = vpack.c.b16 %v374, %v372
    %v549 = vpack.c.b16 %v375, %v373
    %v550 = vpack.c.b16 %v378, %v376
    %v551 = vpack.c.b16 %v379, %v377
    %v552 = vpack.c.b16 %v382, %v380
    %v553 = vpack.c.b16 %v383, %v381
    %v554 = vpack.c.b16 %v386, %v384
    %v555 = vpack.c.b16 %v387, %v385
    %v556 = vpack.c.b16 %v390, %v388
    %v557 = vpack.c.b16 %v391, %v389
    %v558 = vpack.c.b16 %v394, %v392
    %v559 = vpack.c.b16 %v395, %v393
    %v560 = vpack.c.b16 %v398, %v396
    %v561 = vpack.c.b16 %v399, %v397
    %v562 = vpack.c.b16 %v402, %v400
    %v563 = vpack.c.b16 %v403, %v401
    %v564 = vpack.c.b16 %v406, %v404
    %v565 = vpack.c.b16 %v407, %v405
    %v566 = vpack.c.b16 %v410, %v408
    %v567 = vpack.c.b16 %v411, %v409
    %v568 = vpack.c.b16 %v414, %v412
    %v569 = vpack.c.b16 %v415, %v413
    %v570 = vpack.c.b16 %v418, %v416
    %v571 = vpack.c.b16 %v419, %v417
    %v572 = vpack.c.b16 %v422, %v420
    %v573 = vpack.c.b16 %v423, %v421
    %v574 = vpack.c.b16 %v426, %v424
    %v575 = vpack.c.b16 %v427, %v425
    %v576 = vpack.c.b16 %v430, %v428
    %v577 = vpack.c.b16 %v431, %v429
    %v578 = vpack.c.b16 %v434, %v432
    %v579 = vpack.c.b16 %v435, %v433
    %v580 = vpack.c.b16 %v438, %v436
    %v581 = vpack.c.b16 %v439, %v437
    %v582 = vpack.c.b16 %v442, %v440
    %v583 = vpack.c.b16 %v443, %v441
    %v584 = vpack.c.b16 %v446, %v444
    %v585 = vpack.c.b16 %v447, %v445
    %v586 = vpack.c.b16 %v450, %v448
    %v587 = vpack.c.b16 %v451, %v449
    %v588 = vpack.c.b16 %v454, %v452
    %v589 = vpack.c.b16 %v455, %v453
    %v590 = vpack.c.b16 %v458, %v456
    %v591 = vpack.c.b16 %v459, %v457
    %v592 = vpack.c.b16 %v462, %v460
    %v593 = vpack.c.b16 %v463, %v461
    %v594 = vpack.c.b16 %v466, %v464
    %v595 = vpack.c.b16 %v467, %v465
    %v596 = vpack.c.b16 %v470, %v468
    %v597 = vpack.c.b16 %v471, %v469
    %v598 = vpack.c.b16 %v474, %v472
    %v599 = vpack.c.b16 %v475, %v473
    %v600 = vpack.c.b16 %v478, %v476
    %v601 = vpack.c.b16 %v479, %v477
    %v602 = vpack.c.b16 %v482, %v480
    %v603 = vpack.c.b16 %v483, %v481
    %v604 = vpack.c.b16 %v486, %v484
    %v605 = vpack.c.b16 %v487, %v485
    %v606 = vpack.c.b16 %v490, %v488
    %v607 = vpack.c.b16 %v491, %v489
    %v608 = vpack.c.b16 %v494, %v492
    %v609 = vpack.c.b16 %v495, %v493
    %v610 = vpack.c.b16 %v498, %v496
    %v611 = vpack.c.b16 %v499, %v497
    %v612 = vpack.c.b16 %v502, %v500
    %v613 = vpack.c.b16 %v503, %v501
    %v614 = vpack.c.b16 %v506, %v504
    %v615 = vpack.c.b16 %v507, %v505
    %v616 = vpack.c.b16 %v510, %v508
    %v617 = vpack.c.b16 %v511, %v509
    %v618 = vpack.c.b16 %v514, %v512
    %v619 = vpack.c.b16 %v515, %v513
    %v620 = vpack.c.b16 %v518, %v516
    %v621 = vpack.c.b16 %v519, %v517
    %v622 = vpack.c.b16 %v522, %v520
    %v623 = vpack.c.b16 %v523, %v521
    %vm724 = vcmask 261120
    %v726 = vsel %vm724, %v111, 0
    %728 = vmatprep.subr.bf16.mxu0 %v525
    %729 = vmatpush1.bf16.msra.mxu0 %v524
    %730 = vmatprep.subr.bf16.mxu0 %v527
    %731 = vmatpush1.bf16.msra.mxu0 %v526
    %732 = vmatprep.subr.bf16.mxu0 %v529
    %733 = vmatpush1.bf16.msra.mxu0 %v528
    %734 = vmatprep.subr.bf16.mxu0 %v531
    %735 = vmatpush1.bf16.msra.mxu0 %v530
    %736 = vmatprep.subr.bf16.mxu0 %v533
    %737 = vmatpush1.bf16.msra.mxu0 %v532
    %738 = vmatprep.subr.bf16.mxu0 %v535
    %739 = vmatpush1.bf16.msra.mxu0 %v534
    %740 = vmatprep.subr.bf16.mxu0 %v537
    %741 = vmatpush1.bf16.msra.mxu0 %v536
    %742 = vmatprep.subr.bf16.mxu0 %v539
    %743 = vmatpush1.bf16.msra.mxu0 %v538
    %744 = vmatprep.subr.bf16.mxu0 %v541
    %745 = vmatpush1.bf16.msra.mxu0 %v540
    %746 = vmatprep.subr.bf16.mxu0 %v543
    %747 = vmatpush1.bf16.msra.mxu0 %v542
    %748 = vmatprep.subr.bf16.mxu0 %v545
    %749 = vmatpush1.bf16.msra.mxu0 %v544
    %750 = vmatprep.subr.bf16.mxu0 %v547
    %751 = vmatpush1.bf16.msra.mxu0 %v546
    %752 = vmatprep.subr.bf16.mxu0 %v549
    %753 = vmatpush1.bf16.msra.mxu0 %v548
    %754 = vmatprep.subr.bf16.mxu0 %v551
    %755 = vmatpush1.bf16.msra.mxu0 %v550
    %756 = vmatprep.subr.bf16.mxu0 %v553
    %757 = vmatpush1.bf16.msra.mxu0 %v552
    %758 = vmatprep.subr.bf16.mxu0 %v555
    %759 = vmatpush1.bf16.msra.mxu0 %v554
    %760 = vmatprep.mubr.bf16.mxu0 %v106
    %761 = vmatmul.mubr.bf16.gmra.mrb[0].mxu0 %v105
    %v762 = vpop.f32.mrb[0].mxu0
    %v763 = vadd.f32 %v217, %v762
    %v764 = vpop.f32.mrb[0].mxu0
    %v765 = vadd.f32 %v221, %v764
    %v766 = vpop.f32.mrb[0].mxu0
    %v767 = vpop.f32.mrb[0].mxu0
    %768 = vdwg.mxu0
    %769 = vmatprep.subr.bf16.mxu0 %v557
    %770 = vmatpush1.bf16.msra.mxu0 %v556
    %771 = vmatprep.subr.bf16.mxu0 %v559
    %772 = vmatpush1.bf16.msra.mxu0 %v558
    %773 = vmatprep.subr.bf16.mxu0 %v561
    %774 = vmatpush1.bf16.msra.mxu0 %v560
    %775 = vmatprep.subr.bf16.mxu0 %v563
    %776 = vmatpush1.bf16.msra.mxu0 %v562
    %777 = vmatprep.subr.bf16.mxu0 %v565
    %778 = vmatpush1.bf16.msra.mxu0 %v564
    %779 = vmatprep.subr.bf16.mxu0 %v567
    %780 = vmatpush1.bf16.msra.mxu0 %v566
    %781 = vmatprep.subr.bf16.mxu0 %v569
    %782 = vmatpush1.bf16.msra.mxu0 %v568
    %783 = vmatprep.subr.bf16.mxu0 %v571
    %784 = vmatpush1.bf16.msra.mxu0 %v570
    %785 = vmatprep.subr.bf16.mxu0 %v573
    %786 = vmatpush1.bf16.msra.mxu0 %v572
    %787 = vmatprep.subr.bf16.mxu0 %v575
    %788 = vmatpush1.bf16.msra.mxu0 %v574
    %789 = vmatprep.subr.bf16.mxu0 %v577
    %790 = vmatpush1.bf16.msra.mxu0 %v576
    %791 = vmatprep.subr.bf16.mxu0 %v579
    %792 = vmatpush1.bf16.msra.mxu0 %v578
    %793 = vmatprep.subr.bf16.mxu0 %v581
    %794 = vmatpush1.bf16.msra.mxu0 %v580
    %795 = vmatprep.subr.bf16.mxu0 %v583
    %796 = vmatpush1.bf16.msra.mxu0 %v582
    %797 = vmatprep.subr.bf16.mxu0 %v585
    %798 = vmatpush1.bf16.msra.mxu0 %v584
    %799 = vmatprep.subr.bf16.mxu0 %v587
    %800 = vmatpush1.bf16.msra.mxu0 %v586
    %801 = vmatprep.mubr.bf16.mxu0 %v108
    %802 = vmatmul.mubr.bf16.gmra.mrb[0].mxu0 %v107
    %v803 = vpop.f32.mrb[0].mxu0
    %v804 = vadd.f32 %v763, %v803
    %v805 = vpop.f32.mrb[0].mxu0
    %v806 = vadd.f32 %v765, %v805
    %v807 = vpop.f32.mrb[0].mxu0
    %v808 = vpop.f32.mrb[0].mxu0
    %809 = vdwg.mxu0
    %810 = vmatprep.subr.bf16.mxu0 %v589
    %811 = vmatpush1.bf16.msra.mxu0 %v588
    %812 = vmatprep.subr.bf16.mxu0 %v591
    %813 = vmatpush1.bf16.msra.mxu0 %v590
    %814 = vmatprep.subr.bf16.mxu0 %v593
    %815 = vmatpush1.bf16.msra.mxu0 %v592
    %816 = vmatprep.subr.bf16.mxu0 %v595
    %817 = vmatpush1.bf16.msra.mxu0 %v594
    %818 = vmatprep.subr.bf16.mxu0 %v597
    %819 = vmatpush1.bf16.msra.mxu0 %v596
    %820 = vmatprep.subr.bf16.mxu0 %v599
    %821 = vmatpush1.bf16.msra.mxu0 %v598
    %822 = vmatprep.subr.bf16.mxu0 %v601
    %823 = vmatpush1.bf16.msra.mxu0 %v600
    %824 = vmatprep.subr.bf16.mxu0 %v603
    %825 = vmatpush1.bf16.msra.mxu0 %v602
    %826 = vmatprep.subr.bf16.mxu0 %v605
    %827 = vmatpush1.bf16.msra.mxu0 %v604
    %828 = vmatprep.subr.bf16.mxu0 %v607
    %829 = vmatpush1.bf16.msra.mxu0 %v606
    %830 = vmatprep.subr.bf16.mxu0 %v609
    %831 = vmatpush1.bf16.msra.mxu0 %v608
    %832 = vmatprep.subr.bf16.mxu0 %v611
    %833 = vmatpush1.bf16.msra.mxu0 %v610
    %834 = vmatprep.subr.bf16.mxu0 %v613
    %835 = vmatpush1.bf16.msra.mxu0 %v612
    %836 = vmatprep.subr.bf16.mxu0 %v615
    %837 = vmatpush1.bf16.msra.mxu0 %v614
    %838 = vmatprep.subr.bf16.mxu0 %v617
    %839 = vmatpush1.bf16.msra.mxu0 %v616
    %840 = vmatprep.subr.bf16.mxu0 %v619
    %841 = vmatpush1.bf16.msra.mxu0 %v618
    %842 = vmatprep.mubr.bf16.mxu0 %v110
    %843 = vmatmul.mubr.bf16.gmra.mrb[0].mxu0 %v109
    %v844 = vpop.f32.mrb[0].mxu0
    %v845 = vadd.f32 %v804, %v844
    %v846 = vpop.f32.mrb[0].mxu0
    %v847 = vadd.f32 %v806, %v846
    %v848 = vpop.f32.mrb[0].mxu0
    %v849 = vpop.f32.mrb[0].mxu0
    %850 = vdwg.mxu0
    %851 = vmatprep.subr.bf16.mxu0 %v621
    %852 = vmatpush1.bf16.msra.mxu0 %v620
    %853 = vmatprep.subr.bf16.mxu0 %v623
    %854 = vmatpush1.bf16.msra.mxu0 %v622
    %855 = vmatprep.subr.bf16.mxu0 0
    %856 = vmatpush1.bf16.msra.mxu0 0
    %857 = vmatprep.subr.bf16.mxu0 0
    %858 = vmatpush1.bf16.msra.mxu0 0
    %859 = vmatprep.subr.bf16.mxu0 0
    %860 = vmatpush1.bf16.msra.mxu0 0
    %861 = vmatprep.subr.bf16.mxu0 0
    %862 = vmatpush1.bf16.msra.mxu0 0
    %863 = vmatprep.subr.bf16.mxu0 0
    %864 = vmatpush1.bf16.msra.mxu0 0
    %865 = vmatprep.subr.bf16.mxu0 0
    %866 = vmatpush1.bf16.msra.mxu0 0
    %867 = vmatprep.subr.bf16.mxu0 0
    %868 = vmatpush1.bf16.msra.mxu0 0
    %869 = vmatprep.subr.bf16.mxu0 0
    %870 = vmatpush1.bf16.msra.mxu0 0
    %871 = vmatprep.subr.bf16.mxu0 0
    %872 = vmatpush1.bf16.msra.mxu0 0
    %873 = vmatprep.subr.bf16.mxu0 0
    %874 = vmatpush1.bf16.msra.mxu0 0
    %875 = vmatprep.subr.bf16.mxu0 0
    %876 = vmatpush1.bf16.msra.mxu0 0
    %877 = vmatprep.subr.bf16.mxu0 0
    %878 = vmatpush1.bf16.msra.mxu0 0
    %879 = vmatprep.subr.bf16.mxu0 0
    %880 = vmatpush1.bf16.msra.mxu0 0
    %881 = vmatprep.subr.bf16.mxu0 0
    %882 = vmatpush1.bf16.msra.mxu0 0
    %883 = vmatprep.mubr.bf16.mxu0 0
    %884 = vmatmul.mubr.bf16.gmra.mrb[0].mxu0 %v726
    %v885 = vpop.f32.mrb[0].mxu0
    %v886 = vadd.f32 %v845, %v885
    %v887 = vpop.f32.mrb[0].mxu0
    %v888 = vadd.f32 %v847, %v887
    %v889 = vpop.f32.mrb[0].mxu0
    %v890 = vpop.f32.mrb[0].mxu0
    %891 = vdwg.mxu0
    %v892 = vmul.f32 %v886, 0.5
    %v893 = vmul.f32 %v888, 0.5
    %v894 = vmul.f32 %v886, 0.044715
    %v895 = vmul.f32 %v888, 0.044715
    %v896 = vmul.f32 %v894, %v886
    %v897 = vmul.f32 %v895, %v888
    %v898 = vmul.f32 %v896, %v886
    %v899 = vmul.f32 %v897, %v888
    %v900 = vadd.f32 %v886, %v898
    %v901 = vadd.f32 %v888, %v899
    %v902 = vmul.f32 %v900, 0.7978846
    %v903 = vmul.f32 %v901, 0.7978846
    %v904 = vtanh.pop %v902
    %v905 = vtanh.pop %v903
    %v906 = vadd.f32 %v904, 1.0
    %v907 = vadd.f32 %v905, 1.0
    %v908 = vmul.f32 %v892, %v906
    %v909 = vmul.f32 %v893, %v907
    %v910 = vpack.c.bf16 %v908, %v908
    %v911 = vpack.c.bf16 %v909, %v909
    %v912 = vld [vmem:[#allocation7] sm:$0xf]
    %v913 = vld [vmem:[#allocation7 + $0x4] sm:$0xf]
    %v914 = vld [vmem:[#allocation7 + $0x8] sm:$0xf]
    %v915 = vld [vmem:[#allocation7 + $0xc] sm:$0xf]
    %v916 = vld [vmem:[#allocation7 + $0x10] sm:$0xf]
    %v917 = vld [vmem:[#allocation7 + $0x14] sm:$0xf]
    %v918 = vld [vmem:[#allocation7 + $0x18] sm:$0xf]
    %v919 = vld [vmem:[#allocation7 + $0x1c] sm:$0xf]
    %v920 = vld [vmem:[#allocation7 + $0x20] sm:$0xf]
    %v921 = vld [vmem:[#allocation7 + $0x24] sm:$0xf]
    %v922 = vld [vmem:[#allocation7 + $0x28] sm:$0xf]
    %v923 = vld [vmem:[#allocation7 + $0x2c] sm:$0xf]
    %v924 = vld [vmem:[#allocation7 + $0x30] sm:$0xf]
    %v925 = vld [vmem:[#allocation7 + $0x34] sm:$0xf]
    %v926 = vld [vmem:[#allocation7 + $0x38] sm:$0xf]
    %v927 = vld [vmem:[#allocation7 + $0x3c] sm:$0xf]
    %v928 = vld [vmem:[#allocation7 + $0x40] sm:$0xf]
    %v929 = vld [vmem:[#allocation7 + $0x44] sm:$0xf]
    %v930 = vld [vmem:[#allocation7 + $0x48] sm:$0xf]
    %v931 = vld [vmem:[#allocation7 + $0x4c] sm:$0xf]
    %v932 = vld [vmem:[#allocation7 + $0x50] sm:$0xf]
    %v933 = vld [vmem:[#allocation7 + $0x54] sm:$0xf]
    %v934 = vld [vmem:[#allocation7 + $0x58] sm:$0xf]
    %v935 = vld [vmem:[#allocation7 + $0x5c] sm:$0xf]
    %v936 = vld [vmem:[#allocation7 + $0x60] sm:$0xf]
    %v937 = vld [vmem:[#allocation7 + $0x64] sm:$0xf]
    %v938 = vld [vmem:[#allocation7 + $0x68] sm:$0xf]
    %v939 = vld [vmem:[#allocation7 + $0x6c] sm:$0xf]
    %v940 = vld [vmem:[#allocation7 + $0x70] sm:$0xf]
    %v941 = vld [vmem:[#allocation7 + $0x74] sm:$0xf]
    %v942 = vld [vmem:[#allocation7 + $0x78] sm:$0xf]
    %v943 = vld [vmem:[#allocation7 + $0x7c] sm:$0xf]
    %v944 = vld [vmem:[%s4] sm:$0x1]
    %v946 = vlaneseq
    %v947 = vshrl.u32 %v946, 7
    %v948 = vsub.s32 0, %v947
    %v949 = vrot.slane %v944, %v948
    %v983 = vunpack.c.l.b16 %v912
    %v984 = vunpack.c.l.b16 %v913
    %v985 = vunpack.c.l.b16 %v914
    %v986 = vunpack.c.l.b16 %v915
    %v987 = vunpack.c.l.b16 %v916
    %v988 = vunpack.c.l.b16 %v917
    %v989 = vunpack.c.l.b16 %v918
    %v990 = vunpack.c.l.b16 %v919
    %v991 = vunpack.c.l.b16 %v920
    %v992 = vunpack.c.l.b16 %v921
    %v993 = vunpack.c.l.b16 %v922
    %v994 = vunpack.c.l.b16 %v923
    %v995 = vunpack.c.l.b16 %v924
    %v996 = vunpack.c.l.b16 %v925
    %v997 = vunpack.c.l.b16 %v926
    %v998 = vunpack.c.l.b16 %v927
    %v999 = vunpack.c.l.b16 %v928
    %v1000 = vunpack.c.l.b16 %v929
    %v1001 = vunpack.c.l.b16 %v930
    %v1002 = vunpack.c.l.b16 %v931
    %v1003 = vunpack.c.l.b16 %v932
    %v1004 = vunpack.c.l.b16 %v933
    %v1005 = vunpack.c.l.b16 %v934
    %v1006 = vunpack.c.l.b16 %v935
    %v1007 = vunpack.c.l.b16 %v936
    %v1008 = vunpack.c.l.b16 %v937
    %v1009 = vunpack.c.l.b16 %v938
    %v1010 = vunpack.c.l.b16 %v939
    %v1011 = vunpack.c.l.b16 %v940
    %v1012 = vunpack.c.l.b16 %v941
    %v1013 = vunpack.c.l.b16 %v942
    %v1014 = vunpack.c.l.b16 %v943
    %v1015 = vpack.c.b16 %v984, %v983
    %v1016 = vpack.c.b16 %v986, %v985
    %v1017 = vpack.c.b16 %v988, %v987
    %v1018 = vpack.c.b16 %v990, %v989
    %v1019 = vpack.c.b16 %v992, %v991
    %v1020 = vpack.c.b16 %v994, %v993
    %v1021 = vpack.c.b16 %v996, %v995
    %v1022 = vpack.c.b16 %v998, %v997
    %v1023 = vpack.c.b16 %v1000, %v999
    %v1024 = vpack.c.b16 %v1002, %v1001
    %v1025 = vpack.c.b16 %v1004, %v1003
    %v1026 = vpack.c.b16 %v1006, %v1005
    %v1027 = vpack.c.b16 %v1008, %v1007
    %v1028 = vpack.c.b16 %v1010, %v1009
    %v1029 = vpack.c.b16 %v1012, %v1011
    %v1030 = vpack.c.b16 %v1014, %v1013
    %1047 = vmatprep.subr.bf16.mxu0 0
    %1048 = vmatpush1.bf16.msra.mxu0 %v1015
    %1049 = vmatprep.subr.bf16.mxu0 0
    %1050 = vmatpush1.bf16.msra.mxu0 %v1016
    %1051 = vmatprep.subr.bf16.mxu0 0
    %1052 = vmatpush1.bf16.msra.mxu0 %v1017
    %1053 = vmatprep.subr.bf16.mxu0 0
    %1054 = vmatpush1.bf16.msra.mxu0 %v1018
    %1055 = vmatprep.subr.bf16.mxu0 0
    %1056 = vmatpush1.bf16.msra.mxu0 %v1019
    %1057 = vmatprep.subr.bf16.mxu0 0
    %1058 = vmatpush1.bf16.msra.mxu0 %v1020
    %1059 = vmatprep.subr.bf16.mxu0 0
    %1060 = vmatpush1.bf16.msra.mxu0 %v1021
    %1061 = vmatprep.subr.bf16.mxu0 0
    %1062 = vmatpush1.bf16.msra.mxu0 %v1022
    %1063 = vmatprep.subr.bf16.mxu0 0
    %1064 = vmatpush1.bf16.msra.mxu0 %v1023
    %1065 = vmatprep.subr.bf16.mxu0 0
    %1066 = vmatpush1.bf16.msra.mxu0 %v1024
    %1067 = vmatprep.subr.bf16.mxu0 0
    %1068 = vmatpush1.bf16.msra.mxu0 %v1025
    %1069 = vmatprep.subr.bf16.mxu0 0
    %1070 = vmatpush1.bf16.msra.mxu0 %v1026
    %1071 = vmatprep.subr.bf16.mxu0 0
    %1072 = vmatpush1.bf16.msra.mxu0 %v1027
    %1073 = vmatprep.subr.bf16.mxu0 0
    %1074 = vmatpush1.bf16.msra.mxu0 %v1028
    %1075 = vmatprep.subr.bf16.mxu0 0
    %1076 = vmatpush1.bf16.msra.mxu0 %v1029
    %1077 = vmatprep.subr.bf16.mxu0 0
    %1078 = vmatpush1.bf16.msra.mxu0 %v1030
    %1079 = vmatprep.mubr.bf16.mxu0 %v911
    %1080 = vmatmul.mubr.bf16.gmra.mrb[0].mxu0 %v910
    %v1081 = vpop.f32.mrb[0].mxu0
    %v1082 = vadd.f32 %v949, %v1081
    %v1083 = vpop.f32.mrb[0].mxu0
    %v1084 = vpop.f32.mrb[0].mxu0
    %v1085 = vpop.f32.mrb[0].mxu0
    %1086 = vdwg.mxu0
    %vm1087 = vcmask 25600
    %1088 = vst.msk [vmem:[#allocation8] sm:$0x3] %vm1087, %v1082
    // Predicated region
    $region34: #{advanced_prediction.1} parent=1 // pred_check
      _
    $region35: #{advanced_prediction.1} parent=1 // pred_check_branch
      %1090 = sbr.rel (0) target = $region37
    $region36: #{advanced_prediction.1} parent=1 // pred_region
      %s1092 = ssub.s32 32, 32
      %1093 = vsyncadd [#allocation4], %s1092
      %s1095 = sshll.u32 [#allocation8], 4
      %s1096 = int_to_ptr.vmem [resolvable:$true] %s1095
      %1098 = dma.vmem_to_hbm [thread:$0]  %s1096, 32, %s5, [#allocation4]
    $region37: #{advanced_prediction.1} parent=1 // pred_fallthru
      _
    // Predicated region
    $region38: #{advanced_prediction.1} parent=1 // pred_check
      _
    $region39: #{advanced_prediction.1} parent=1 // pred_check_branch
      %1100 = sbr.rel (0) target = $region41
    $region40: #{advanced_prediction.1} parent=1 // pred_region
      %1101 = dma.done [#allocation4], 32
    $region41: #{advanced_prediction.1} parent=1 // pred_fallthru
      _
    %1102 = vsyncpa [#allocation3], 1
    %1103 = vsyncpa [#allocation6], 1
    %1104 = vsyncpa [#allocation4], 1

</llo_original>
